<compile_context>
chip_gen: v7x
topology: tpu7x:2x2x1
jax: 0.10.0
libtpu: 0.0.40
codegen_flags: <defaults>
</compile_context>

<pallas_src>
import functools
import math

import jax
import jax.numpy as jnp
from jax.experimental import pallas as pl
from jax.experimental.pallas import tpu as pltpu


_LANE = 128
_SUBLANE = 8


def _round_up(a, b):
    return ((a + b - 1) // b) * b


def _vmem_limit_bytes():
    """Generation-specific scoped-VMEM limit (~5/8 of physical capacity)."""
    try:
        phys = int(pltpu.get_tpu_info().vmem_capacity_bytes)
    except Exception:
        phys = 64 * 1024 * 1024  # conservative fallback (v7x-sized)
    return int(max(32 * 1024 * 1024, min((phys * 5) // 8, 96 * 1024 * 1024)))


# ----------------------------------------------------------------------------
# Fused single-pass kernel (whole x resident in VMEM).
# ----------------------------------------------------------------------------
def _fused_kernel(x_ref, w_ref, b_ref, o_ref, *, k, c_per_group, inv_n, eps):
    x = x_ref[...].astype(jnp.float32)                      # (n_rows, W)
    s = jnp.sum(x, axis=0, keepdims=True)                   # (1, W)
    sq = jnp.sum(x * x, axis=0, keepdims=True)               # (1, W)

    # Combine the k lane-replicated channel groups (k is a power of two):
    # after log2(k) roll+add doublings every lane holds its channel's total.
    shift_amt = c_per_group
    while shift_amt < k * c_per_group:
        s = s + pltpu.roll(s, shift=shift_amt, axis=1)
        sq = sq + pltpu.roll(sq, shift=shift_amt, axis=1)
        shift_amt *= 2

    mean = s * inv_n
    var = jnp.maximum(sq * inv_n - mean * mean, 0.0)          # biased (training BN)
    inv_std = jax.lax.rsqrt(var + eps)
    scale = w_ref[...] * inv_std
    off = b_ref[...] - mean * scale
    o_ref[...] = (x * scale + off).astype(o_ref.dtype)


# ----------------------------------------------------------------------------
# Two-pass streaming kernels.
# ----------------------------------------------------------------------------
def _stats_kernel(x_ref, sum_ref, sq_ref, *, tile_n, steps_per_core, n_rows,
                  needs_mask):
    """Pass 1: accumulate per-lane-column sum / sum-of-squares into the
    per-core (1, 1, W) output slot (resident across the arbitrary axis)."""
    c = pl.program_id(0)
    i = pl.program_id(1)

    @pl.when(i == 0)
    def _init():
        sum_ref[...] = jnp.zeros_like(sum_ref)
        sq_ref[...] = jnp.zeros_like(sq_ref)

    x = x_ref[...].astype(jnp.float32)
    if needs_mask:
        # Zero out rows past the true extent (partial last tile and/or the
        # clamped duplicate tile of the second core-half).
        base = (c * steps_per_core + i) * tile_n
        row = jax.lax.broadcasted_iota(jnp.int32, (tile_n, 1), 0) + base
        x = jnp.where(row < n_rows, x, 0.0)

    sum_ref[...] += jnp.sum(x, axis=0, keepdims=True).reshape(1, 1, -1)
    sq_ref[...] += jnp.sum(x * x, axis=0, keepdims=True).reshape(1, 1, -1)


def _normalize_kernel(x_ref, scale_ref, shift_ref, o_ref):
    """Pass 2: y = x * scale + shift (mean/inv_std/affine pre-folded)."""
    x = x_ref[...].astype(jnp.float32)
    o_ref[...] = (x * scale_ref[...] + shift_ref[...]).astype(o_ref.dtype)


# ----------------------------------------------------------------------------
# Wrapper.
# ----------------------------------------------------------------------------
def batchnorm_forward(x, weight, bias, eps=1e-5, *, force_two_pass=False,
                      max_tile_rows=None):
    """x: (B, T, C); weight/bias: (C,). Returns (B, T, C)."""
    B, T, C = x.shape
    N = B * T
    itemsize = jnp.dtype(x.dtype).itemsize
    sublane_q = max(_SUBLANE, 32 // itemsize)          # 8 f32 / 16 bf16 / 32 int8
    vmem_limit = _vmem_limit_bytes()

    # Lane-dense layout when it needs no padding: fold k consecutive rows into
    # the lane axis so the last dim W = k*C is a multiple of 128.  k is always
    # a power of two.  Otherwise stream (N, C) with full-C blocks (legal since
    # the block last dim equals the full array dim).  Pure reshapes only.
    k = _LANE // math.gcd(C, _LANE)
    if N % k != 0:
        k = 1
    W = k * C
    n_rows = N // k
    x2d = x.reshape(n_rows, W)

    w32 = weight.astype(jnp.float32)
    b32 = bias.astype(jnp.float32)

    # -------- small-input fast path: single fused kernel, x resident --------
    x_f32_bytes = n_rows * W * 4
    if (not force_two_pass) and 8 * x_f32_bytes <= vmem_limit:
        w_wide = jnp.tile(w32, k).reshape(1, W)
        b_wide = jnp.tile(b32, k).reshape(1, W)
        kern = functools.partial(_fused_kernel, k=k, c_per_group=C,
                                 inv_n=1.0 / N, eps=float(eps))
        out2d = pl.pallas_call(
            kern,
            out_shape=jax.ShapeDtypeStruct((n_rows, W), x.dtype),
            grid_spec=pltpu.PrefetchScalarGridSpec(
                num_scalar_prefetch=0,
                grid=(1,),
                in_specs=[pl.BlockSpec((n_rows, W), lambda i: (0, 0)),
                          pl.BlockSpec((1, W), lambda i: (0, 0)),
                          pl.BlockSpec((1, W), lambda i: (0, 0))],
                out_specs=pl.BlockSpec((n_rows, W), lambda i: (0, 0)),
            ),
            compiler_params=pltpu.CompilerParams(
                dimension_semantics=("arbitrary",),
                vmem_limit_bytes=vmem_limit),
        )(x2d, w_wide, b_wide)
        return out2d.reshape(B, T, C)

    # -------- two-pass streaming path --------
    # Tile rows from the VMEM budget: pass 1 uses 2 input buffers + ~3 f32
    # temporaries; pass 2 uses 2 in + 2 out buffers + ~2 f32 temporaries.
    bpr_in = W * itemsize
    bpr_f32 = W * 4
    budget = (vmem_limit * 3) // 4
    tile_n = max(sublane_q, budget // (4 * bpr_in + 3 * bpr_f32))
    if max_tile_rows is not None:
        tile_n = min(tile_n, max_tile_rows)
    tile_n = min(tile_n, _round_up(n_rows, sublane_q))
    tile_n = max(sublane_q, (tile_n // sublane_q) * sublane_q)

    n_tiles = -(-n_rows // tile_n)
    spc = -(-n_tiles // 2)               # steps per core (leading parallel axis of 2)
    needs_mask = (2 * spc * tile_n != n_rows)

    # ------------- pass 1: per-channel sum / sum-of-squares -------------
    stats_kern = functools.partial(_stats_kernel, tile_n=tile_n,
                                   steps_per_core=spc, n_rows=n_rows,
                                   needs_mask=needs_mask)
    sum_w, sq_w = pl.pallas_call(
        stats_kern,
        out_shape=(jax.ShapeDtypeStruct((2, 1, W), jnp.float32),
                   jax.ShapeDtypeStruct((2, 1, W), jnp.float32)),
        grid_spec=pltpu.PrefetchScalarGridSpec(
            num_scalar_prefetch=0,
            grid=(2, spc),
            in_specs=[pl.BlockSpec(
                (tile_n, W),
                lambda c, i: (jnp.minimum(c * spc + i, n_tiles - 1), 0))],
            out_specs=(pl.BlockSpec((1, 1, W), lambda c, i: (c, 0, 0)),
                       pl.BlockSpec((1, 1, W), lambda c, i: (c, 0, 0))),
        ),
        compiler_params=pltpu.CompilerParams(
            dimension_semantics=("parallel", "arbitrary"),
            vmem_limit_bytes=vmem_limit),
    )(x2d)

    # ---- finalize stats on tiny C-sized vectors (plain JAX) ----
    ch_sum = jnp.sum(sum_w.reshape(2, k, C), axis=(0, 1))
    ch_sq = jnp.sum(sq_w.reshape(2, k, C), axis=(0, 1))
    mean = ch_sum / N
    var = jnp.maximum(ch_sq / N - mean * mean, 0.0)   # biased var (training BN)
    # TODO(synk): E[x^2]-E[x]^2 in f32 can cancel for |mean| >> std; switch to a
    # shifted sum-of-squares if tighter tolerances are ever required.
    inv_std = jax.lax.rsqrt(var + jnp.float32(eps))
    scale = w32 * inv_std                              # fold affine into FMA
    shift = b32 - mean * scale
    scale_w = jnp.tile(scale, k).reshape(1, W)
    shift_w = jnp.tile(shift, k).reshape(1, W)

    # ------------- pass 2: normalize (row-parallel, partial tail OK) -------------
    out2d = pl.pallas_call(
        _normalize_kernel,
        out_shape=jax.ShapeDtypeStruct((n_rows, W), x.dtype),
        grid_spec=pltpu.PrefetchScalarGridSpec(
            num_scalar_prefetch=0,
            grid=(n_tiles,),
            in_specs=[pl.BlockSpec((tile_n, W), lambda i: (i, 0)),
                      pl.BlockSpec((1, W), lambda i: (0, 0)),
                      pl.BlockSpec((1, W), lambda i: (0, 0))],
            out_specs=pl.BlockSpec((tile_n, W), lambda i: (i, 0)),
        ),
        compiler_params=pltpu.CompilerParams(
            dimension_semantics=("parallel",),
            vmem_limit_bytes=vmem_limit),
    )(x2d, scale_w, shift_w)

    return out2d.reshape(B, T, C)


def reference_forward(x, weight, bias, eps=1e-5):
    # Pure-JAX reference mirroring the PyTorch module in training mode.
    mean = jnp.mean(x, axis=(0, 1), keepdims=True)
    var = jnp.mean((x - mean) ** 2, axis=(0, 1), keepdims=True)
    x_hat = (x - mean) / jnp.sqrt(var + eps)
    return weight.reshape(1, 1, -1) * x_hat + bias.reshape(1, 1, -1)


if __name__ == "__main__":
    eps = 1e-5
    key = jax.random.PRNGKey(0)
    k1, k2, k3, k4 = jax.random.split(key, 4)

    # Case 1: module-default shapes/params (weight=ones, bias=zeros); fused path.
    B, T, C = 2, 8, 32
    x = jax.random.normal(k1, (B, T, C), dtype=jnp.float32)
    weight = jnp.ones((C,), dtype=jnp.float32)
    bias = jnp.zeros((C,), dtype=jnp.float32)
    out = jax.block_until_ready(batchnorm_forward(x, weight, bias, eps))
    ref = reference_forward(x, weight, bias, eps)
    assert out.shape == (B, T, C)
    assert jnp.allclose(out, ref, atol=1e-4, rtol=1e-4)

    # Case 2: larger shape + non-trivial affine; default (fused resident) path.
    B2, T2, C2 = 2, 6000, 64
    x2 = jax.random.normal(k2, (B2, T2, C2), dtype=jnp.float32)
    w2 = jax.random.normal(k3, (C2,), dtype=jnp.float32)
    b2 = jnp.linspace(-1.0, 1.0, C2, dtype=jnp.float32)
    out2 = jax.block_until_ready(batchnorm_forward(x2, w2, b2, eps))
    ref2 = reference_forward(x2, w2, b2, eps)
    assert out2.shape == (B2, T2, C2)
    assert jnp.allclose(out2, ref2, atol=5e-4, rtol=5e-4)

    # Case 3: same data through the two-pass streaming path with small tiles,
    # exercising cross-tile accumulation, the 2-way core-split grid axis and
    # the ragged-tail masking (6000 rows, 512-row tiles).
    out3 = jax.block_until_ready(
        batchnorm_forward(x2, w2, b2, eps, force_two_pass=True,
                          max_tile_rows=512))
    assert jnp.allclose(out3, ref2, atol=5e-4, rtol=5e-4)

    # Case 4: channel count with no lane-dense folding possible (C=48, N=20
    # not a multiple of k) -> full-C blocks; fused path.
    B4, T4, C4 = 2, 10, 48
    x4 = jax.random.normal(k4, (B4, T4, C4), dtype=jnp.float32)
    w4 = jnp.linspace(0.5, 1.5, C4, dtype=jnp.float32)
    b4 = jnp.linspace(-0.5, 0.5, C4, dtype=jnp.float32)
    out4 = jax.block_until_ready(batchnorm_forward(x4, w4, b4, eps))
    ref4 = reference_forward(x4, w4, b4, eps)
    assert jnp.allclose(out4, ref4, atol=1e-4, rtol=1e-4)

    # Case 5: two-pass path on the full-C layout with tiny tiles (clamped
    # duplicate tile on the second core-half + row masking + partial stores).
    out5 = jax.block_until_ready(
        batchnorm_forward(x4, w4, b4, eps, force_two_pass=True,
                          max_tile_rows=8))
    assert jnp.allclose(out5, ref4, atol=1e-4, rtol=1e-4)

    print("KERNEL_OK")
</pallas_src>

<mosaic_0001>
module attributes {stable_mosaic.version = 11 : i64} {
  func.func @_fused_kernel(%arg0: i32, %arg1: memref<4x128xf32, #tpu.memory_space<vmem>>, %arg2: memref<1x128xf32, #tpu.memory_space<vmem>>, %arg3: memref<1x128xf32, #tpu.memory_space<vmem>>, %arg4: memref<4x128xf32, #tpu.memory_space<vmem>>) attributes {dimension_semantics = [#tpu.dimension_semantics<arbitrary>], iteration_bounds = array<i64: 1>, scalar_prefetch = 0 : i64, scratch_operands = 0 : i64, tpu.core_type = #tpu.core_type<tc>, window_params = [{pipeline_mode = #tpu.pipeline_mode<synchronous>, transform_indices = @transform_0, window_bounds = array<i64: 4, 128>}, {pipeline_mode = #tpu.pipeline_mode<synchronous>, transform_indices = @transform_1, window_bounds = array<i64: 1, 128>}, {pipeline_mode = #tpu.pipeline_mode<synchronous>, transform_indices = @transform_2, window_bounds = array<i64: 1, 128>}, {pipeline_mode = #tpu.pipeline_mode<synchronous>, transform_indices = @transform_3, window_bounds = array<i64: 4, 128>}]} {
    %c0 = arith.constant 0 : index
    %c0_0 = arith.constant 0 : index
    %0 = vector.load %arg1[%c0, %c0_0] : memref<4x128xf32, #tpu.memory_space<vmem>>, vector<4x128xf32>
    %cst = arith.constant dense<0.000000e+00> : vector<128xf32>
    %1 = vector.multi_reduction <add>, %0, %cst [0] : vector<4x128xf32> to vector<128xf32>
    %2 = vector.shape_cast %1 : vector<128xf32> to vector<1x128xf32>
    %3 = arith.mulf %0, %0 : vector<4x128xf32>
    %cst_1 = arith.constant dense<0.000000e+00> : vector<128xf32>
    %4 = vector.multi_reduction <add>, %3, %cst_1 [0] : vector<4x128xf32> to vector<128xf32>
    %5 = vector.shape_cast %4 : vector<128xf32> to vector<1x128xf32>
    %c32_i32 = arith.constant 32 : i32
    %6 = tpu.dynamic_rotate %2 by %c32_i32 dim 1 : vector<1x128xf32>, i32 -> vector<1x128xf32>
    %7 = arith.addf %2, %6 : vector<1x128xf32>
    %c32_i32_2 = arith.constant 32 : i32
    %8 = tpu.dynamic_rotate %5 by %c32_i32_2 dim 1 : vector<1x128xf32>, i32 -> vector<1x128xf32>
    %9 = arith.addf %5, %8 : vector<1x128xf32>
    %c64_i32 = arith.constant 64 : i32
    %10 = tpu.dynamic_rotate %7 by %c64_i32 dim 1 : vector<1x128xf32>, i32 -> vector<1x128xf32>
    %11 = arith.addf %7, %10 : vector<1x128xf32>
    %c64_i32_3 = arith.constant 64 : i32
    %12 = tpu.dynamic_rotate %9 by %c64_i32_3 dim 1 : vector<1x128xf32>, i32 -> vector<1x128xf32>
    %13 = arith.addf %9, %12 : vector<1x128xf32>
    %cst_4 = arith.constant 6.250000e-02 : f32
    %14 = vector.broadcast %cst_4 : f32 to vector<1x128xf32>
    %15 = arith.mulf %11, %14 : vector<1x128xf32>
    %cst_5 = arith.constant 6.250000e-02 : f32
    %16 = vector.broadcast %cst_5 : f32 to vector<1x128xf32>
    %17 = arith.mulf %13, %16 : vector<1x128xf32>
    %18 = arith.mulf %15, %15 : vector<1x128xf32>
    %19 = arith.subf %17, %18 : vector<1x128xf32>
    %cst_6 = arith.constant 0.000000e+00 : f32
    %20 = vector.broadcast %cst_6 : f32 to vector<1x128xf32>
    %21 = arith.maximumf %19, %20 : vector<1x128xf32>
    %cst_7 = arith.constant 9.99999974E-6 : f32
    %22 = vector.broadcast %cst_7 : f32 to vector<1x128xf32>
    %23 = arith.addf %21, %22 : vector<1x128xf32>
    %24 = math.rsqrt %23 : vector<1x128xf32>
    %c0_8 = arith.constant 0 : index
    %c0_9 = arith.constant 0 : index
    %25 = vector.load %arg2[%c0_8, %c0_9] : memref<1x128xf32, #tpu.memory_space<vmem>>, vector<1x128xf32>
    %26 = arith.mulf %25, %24 : vector<1x128xf32>
    %c0_10 = arith.constant 0 : index
    %c0_11 = arith.constant 0 : index
    %27 = vector.load %arg3[%c0_10, %c0_11] : memref<1x128xf32, #tpu.memory_space<vmem>>, vector<1x128xf32>
    %28 = arith.mulf %15, %26 : vector<1x128xf32>
    %29 = arith.subf %27, %28 : vector<1x128xf32>
    %30 = vector.broadcast %26 : vector<1x128xf32> to vector<4x128xf32>
    %31 = arith.mulf %0, %30 : vector<4x128xf32>
    %32 = vector.broadcast %29 : vector<1x128xf32> to vector<4x128xf32>
    %33 = arith.addf %31, %32 : vector<4x128xf32>
    %c0_12 = arith.constant 0 : index
    %c0_13 = arith.constant 0 : index
    %34 = vector.load %arg4[%c0_12, %c0_13] : memref<4x128xf32, #tpu.memory_space<vmem>>, vector<4x128xf32>
    tpu.vector_store %arg4[%c0_12, %c0_13], %33 {strides = array<i32>} : memref<4x128xf32, #tpu.memory_space<vmem>>, vector<4x128xf32>,
    return
  }
  func.func @transform_0(%arg0: i32) -> (i32, i32) {
    %c0_i32 = arith.constant 0 : i32
    %c0_i32_0 = arith.constant 0 : i32
    %c0_i32_1 = arith.constant 0 : i32
    return %c0_i32, %c0_i32_0 : i32, i32
  }
  func.func @transform_1(%arg0: i32) -> (i32, i32) {
    %c0_i32 = arith.constant 0 : i32
    %c0_i32_0 = arith.constant 0 : i32
    %c0_i32_1 = arith.constant 0 : i32
    return %c0_i32, %c0_i32_0 : i32, i32
  }
  func.func @transform_2(%arg0: i32) -> (i32, i32) {
    %c0_i32 = arith.constant 0 : i32
    %c0_i32_0 = arith.constant 0 : i32
    %c0_i32_1 = arith.constant 0 : i32
    return %c0_i32, %c0_i32_0 : i32, i32
  }
  func.func @transform_3(%arg0: i32) -> (i32, i32) {
    %c0_i32 = arith.constant 0 : i32
    %c0_i32_0 = arith.constant 0 : i32
    %c0_i32_1 = arith.constant 0 : i32
    return %c0_i32, %c0_i32_0 : i32, i32
  }
}

</mosaic_0001>

<llo_original>
// kernel: tpu_custom_call.1
$region0: #{tpu_custom_call.1}
  #allocation0 [shape = 'u32[]', space=smem, size = 0x4, offset = 0x4, fixed_abs, tag = 'smem constant byte address 0x4 - core index']
  #allocation1 [shape = 'u32[144,128]{1,0:T(1,128)}', space=vmem, size = 0x12000, scoped, tag = 'internal scratch']
  %s0 = inlined_call_operand.hbm [shape: f32[4,128], index: 0, kind: input, shape index: {}]
  %s1 = inlined_call_operand.vmem [shape: f32[1,128], index: 1, kind: input, shape index: {}]
  %s2 = inlined_call_operand.vmem [shape: f32[1,128], index: 2, kind: input, shape index: {}]
  %s3 = inlined_call_operand.hbm [shape: f32[4,128], index: 3, kind: output, shape index: {}]
  %s4 = sld [smem:[#allocation0]]
  $region26: #{tpu_custom_call.1} parent=0
    _
  %s6 = ssub.s32 1, %s4
  %s7 = scalar_select 0, %s6, %s4
  $region1: #{tpu_custom_call.1} parent=0
    #allocation2 [shape = 'u8[2048]{0}', space=vmem, size = 0x800, scoped, tag = 'input window, operand 0, single buffered']
    #allocation3 [shape = 's32[1]{0}', space=sflag, size = 0x4, scoped, tag = 'scoped memory for tpu_custom_call.1']
    #allocation4 [shape = 's32[1]{0}', space=sflag, size = 0x4, scoped, tag = 'scoped memory for tpu_custom_call.1']
    #allocation5 [shape = 'u8[2048]{0}', space=vmem, size = 0x800, scoped, tag = 'output window, operand 0, single buffered']
    %8 = vsyncpa [#allocation3], 0
    %9 = vsyncpa [#allocation4], 0
    // Predicated region
    $region2: #{tpu_custom_call.1} parent=1 // pred_check
      _
    $region3: #{tpu_custom_call.1} parent=1 // pred_check_branch
      %11 = sbr.rel (0) target = $region5
    $region4: #{tpu_custom_call.1} parent=1 // pred_region
      %s13 = ssub.s32 64, 64
      %14 = vsyncadd [#allocation3], %s13
      %s16 = sshll.u32 [#allocation2], 4
      %s17 = int_to_ptr.vmem [resolvable:$true] %s16
      %19 = dma.hbm_to_vmem [thread:$0]  %s0, 64, %s17, [#allocation3]
    $region5: #{tpu_custom_call.1} parent=1 // pred_fallthru
      _
    // Predicated region
    $region6: #{tpu_custom_call.1} parent=1 // pred_check
      _
    $region7: #{tpu_custom_call.1} parent=1 // pred_check_branch
      %21 = sbr.rel (0) target = $region9
    $region8: #{tpu_custom_call.1} parent=1 // pred_region
      _
    $region9: #{tpu_custom_call.1} parent=1 // pred_fallthru
      _
    // Predicated region
    $region10: #{tpu_custom_call.1} parent=1 // pred_check
      _
    $region11: #{tpu_custom_call.1} parent=1 // pred_check_branch
      %23 = sbr.rel (0) target = $region13
    $region12: #{tpu_custom_call.1} parent=1 // pred_region
      _
    $region13: #{tpu_custom_call.1} parent=1 // pred_fallthru
      _
    // Predicated region
    $region14: #{tpu_custom_call.1} parent=1 // pred_check
      _
    $region15: #{tpu_custom_call.1} parent=1 // pred_check_branch
      %25 = sbr.rel (0) target = $region17
    $region16: #{tpu_custom_call.1} parent=1 // pred_region
      %26 = dma.done [#allocation3], 64
    $region17: #{tpu_custom_call.1} parent=1 // pred_fallthru
      _
    %v27 = vld [vmem:[#allocation2] sm:$0xf]
    %vm28 = vcmask 1043456
    %v29 = vsel %vm28, %v27, 0.0
    %v30 = vrot.slane %v29, 4
    %v31 = vadd.f32 %v29, %v30
    %v32 = vrot.slane %v31, 2
    %v33 = vadd.f32 %v31, %v32
    %v34 = vrot.slane %v33, 1
    %v35 = vadd.f32 %v33, %v34
    %v36 = vmul.f32 %v27, %v27
    %v37 = vsel %vm28, %v36, 0.0
    %v38 = vrot.slane %v37, 4
    %v39 = vadd.f32 %v37, %v38
    %v40 = vrot.slane %v39, 2
    %v41 = vadd.f32 %v39, %v40
    %v42 = vrot.slane %v41, 1
    %v43 = vadd.f32 %v41, %v42
    %44 = vrot.lane.b32.xlu0 %v35, 32
    %v45 = vpop.permute.xlu0 %44
    %v46 = vadd.f32 %v35, %v45
    %47 = vrot.lane.b32.xlu0 %v43, 32
    %v48 = vpop.permute.xlu0 %47
    %v49 = vadd.f32 %v43, %v48
    %50 = vrot.lane.b32.xlu0 %v46, 64
    %v51 = vpop.permute.xlu0 %50
    %v52 = vadd.f32 %v46, %v51
    %53 = vrot.lane.b32.xlu0 %v49, 64
    %v54 = vpop.permute.xlu0 %53
    %v55 = vadd.f32 %v49, %v54
    %v56 = vmul.f32 %v52, 0.0625
    %v57 = vmul.f32 %v55, 0.0625
    %v58 = vmul.f32 %v56, %v56
    %v59 = vsub.f32 %v57, %v58
    %v60 = vmax.f32 %v59, 0.0
    %v61 = vadd.f32 %v60, 1e-05
    %v62 = vrsqrt.pop %v61
    %v63 = vld [vmem:[%s1] sm:$0x1]
    %v64 = vmul.f32 %v63, %v62
    %v65 = vld [vmem:[%s2] sm:$0x1]
    %v66 = vmul.f32 %v56, %v64
    %v67 = vsub.f32 %v65, %v66
    %v69 = vlaneseq
    %v70 = vshrl.u32 %v69, 7
    %v71 = vsub.s32 0, %v70
    %v72 = vrot.slane %v64, %v71
    %v74 = vmul.f32 %v27, %v72
    %v76 = vlaneseq
    %v77 = vshrl.u32 %v76, 7
    %v78 = vsub.s32 0, %v77
    %v79 = vrot.slane %v67, %v78
    %v81 = vadd.f32 %v74, %v79
    %82 = vst [vmem:[#allocation5] sm:$0xf] %v81
    // Predicated region
    $region18: #{tpu_custom_call.1} parent=1 // pred_check
      _
    $region19: #{tpu_custom_call.1} parent=1 // pred_check_branch
      %84 = sbr.rel (0) target = $region21
    $region20: #{tpu_custom_call.1} parent=1 // pred_region
      %s86 = ssub.s32 64, 64
      %87 = vsyncadd [#allocation4], %s86
      %s89 = sshll.u32 [#allocation5], 4
      %s90 = int_to_ptr.vmem [resolvable:$true] %s89
      %92 = dma.vmem_to_hbm [thread:$0]  %s90, 64, %s3, [#allocation4]
    $region21: #{tpu_custom_call.1} parent=1 // pred_fallthru
      _
    // Predicated region
    $region22: #{tpu_custom_call.1} parent=1 // pred_check
      _
    $region23: #{tpu_custom_call.1} parent=1 // pred_check_branch
      %94 = sbr.rel (0) target = $region25
    $region24: #{tpu_custom_call.1} parent=1 // pred_region
      %95 = dma.done [#allocation4], 64
    $region25: #{tpu_custom_call.1} parent=1 // pred_fallthru
      _
    %96 = vsyncpa [#allocation3], 1
    %97 = vsyncpa [#allocation4], 1

</llo_original>
